<compile_context>
chip_gen: v5e
topology: v5e:2x2
jax: 0.10.0
libtpu: 0.0.40
codegen_flags: <defaults>
</compile_context>

<pallas_src>
import functools
import math

import jax
import jax.numpy as jnp
from jax.experimental import pallas as pl
from jax.experimental.pallas import tpu as pltpu

_MAX_CONTEXT_SIZE = 10000

_TARGET_TILE_BYTES = 1 << 20         # ~1 MiB per (T, D) tile: amortizes per-step overhead, v7x-safe
_RESIDENT_TABLE_BUDGET = 40 << 20    # conservative residency budget (fits v7x's 64 MiB/TC)
_VMEM_CAP = 64 << 20                 # never request more scoped VMEM than v7x physically has


def make_pos_embed(max_len: int, embed_dim: int) -> jnp.ndarray:
    """Replicates the sinusoidal buffer built in Embed.__init__ (plain JAX glue)."""
    assert embed_dim % 2 == 0, "sinusoidal positional encoding assumes even embed_dim"
    position = jnp.arange(max_len, dtype=jnp.float32)[:, None]                      # (L, 1)
    div_term = jnp.power(
        10000.0, jnp.arange(embed_dim // 2, dtype=jnp.float32) * 2.0 / embed_dim)   # (D/2,)
    angles = position / div_term                                                     # (L, D/2)
    pe = jnp.zeros((max_len, embed_dim), dtype=jnp.float32)
    pe = pe.at[:, 0::2].set(jnp.sin(angles))
    pe = pe.at[:, 1::2].set(jnp.cos(angles))
    return pe


def _embed_resident_kernel(ids_ref, emb_ref, pos_ref, out_ref, gather_buf,
                           *, emb_factor, s_padded, tile):
    """Embedding table is VMEM-resident; the gather is plain in-VMEM dynamic row copies."""
    st = pl.program_id(0)          # sequence-tile index
    b = pl.program_id(1)           # batch index (innermost -> pos tile reused)
    base = b * s_padded + st * tile

    # Gather this tile's T rows from the resident table into the (T, D) scratch.
    @pl.loop(0, tile)
    def _(i):
        tok = ids_ref[base + i]                                   # SMEM scalar read
        gather_buf[pl.ds(i, 1), :] = emb_ref[pl.ds(tok, 1), :]    # VMEM -> VMEM row copy

    # One vectorized scale + positional add over the whole (T, D) tile, one dense store.
    scaled = gather_buf[...].astype(jnp.float32) * emb_factor \
        + pos_ref[...].astype(jnp.float32)
    out_ref[0] = scaled.astype(out_ref.dtype)


def _embed_gather_kernel(ids_ref, emb_hbm, pos_ref, out_ref, gather_buf, sem,
                         *, emb_factor, s_padded, tile, num_b):
    """Embedding table stays in HBM; rows are gathered with double-buffered row DMAs."""
    st = pl.program_id(0)
    b = pl.program_id(1)
    num_steps = pl.num_programs(0) * num_b
    step = st * num_b + b                              # linear grid step (batch innermost)
    slot = step % 2

    def issue(fetch_step, slot_idx):
        fetch_b = fetch_step % num_b
        fetch_st = fetch_step // num_b
        fetch_base = fetch_b * s_padded + fetch_st * tile

        @pl.loop(0, tile)
        def _(i):
            tok = ids_ref[fetch_base + i]
            pltpu.make_async_copy(
                emb_hbm.at[pl.ds(tok, 1), :],
                gather_buf.at[slot_idx, pl.ds(i, 1), :],
                sem.at[slot_idx],
            ).start()

    # Prologue: the very first step has nothing in flight yet -> fetch its own rows.
    @pl.when(step == 0)
    def _():
        issue(step, slot)

    # Prefetch the NEXT step's rows into the other slot (overlaps with compute below).
    @pl.when(step + 1 < num_steps)
    def _():
        issue(step + 1, 1 - slot)

    # Drain the current slot: one wait per issued (1, D) copy (identical byte counts, so
    # the dummy same-shape descriptors decrement the semaphore by exactly the right amount).
    @pl.loop(0, tile)
    def _(i):
        pltpu.make_async_copy(
            emb_hbm.at[pl.ds(0, 1), :],
            gather_buf.at[slot, pl.ds(i, 1), :],
            sem.at[slot],
        ).wait()

    scaled = gather_buf[slot].astype(jnp.float32) * emb_factor \
        + pos_ref[...].astype(jnp.float32)
    out_ref[0] = scaled.astype(out_ref.dtype)


def _pick_token_tile(seq_len: int, embed_dim: int, itemsize: int) -> int:
    """T tokens per tile: ~1 MiB of (T, D), multiple of 8, no padding blow-up for short S."""
    target = max(8, _TARGET_TILE_BYTES // max(embed_dim * itemsize, 1))
    seq_ceil = pl.cdiv(seq_len, 8) * 8                # never tile wider than the sequence needs
    tile = int(min(target, seq_ceil))
    return max(8, (tile // 8) * 8)


def embed_forward(ids: jnp.ndarray, embed_table: jnp.ndarray, pos_embed: jnp.ndarray,
                  *, force_hbm_gather: bool = False) -> jnp.ndarray:
    """ids: (B, S) int; embed_table: (V, D); pos_embed: (>=S, D) -> (B, S, D)."""
    B, S = ids.shape
    V, D = embed_table.shape
    itemsize = jnp.dtype(embed_table.dtype).itemsize

    T = _pick_token_tile(S, D, itemsize)
    n_st = pl.cdiv(S, T)
    S_pad = n_st * T

    # Clip token ids (no OOB row reads) and pad the sequence to a tile multiple.
    ids_p = jnp.clip(ids.astype(jnp.int32), 0, V - 1)
    if S_pad != S:
        ids_p = jnp.pad(ids_p, ((0, 0), (0, S_pad - S)))
    ids_flat = ids_p.reshape(-1)                      # 1-D SMEM scalar prefetch (no 2-D padding)

    # Positional table with exactly S_pad rows (zero-pad the tail; it is sliced off below).
    pos = pos_embed[:min(S_pad, pos_embed.shape[0])]
    if pos.shape[0] < S_pad:
        pos = jnp.pad(pos, ((0, S_pad - pos.shape[0]), (0, 0)))

    emb_factor = float(math.sqrt(D))
    tile_bytes = T * D * itemsize
    pos_tile_bytes = T * D * 4
    out_tile_bytes = T * D * itemsize
    table_bytes = V * D * itemsize

    # Keep the table VMEM-resident iff (double-buffered) table + pipelined tiles fit the budget.
    resident_need = (2 * table_bytes + 2 * pos_tile_bytes + 2 * out_tile_bytes
                     + tile_bytes + (2 << 20))
    use_resident = (not force_hbm_gather) and resident_need <= _RESIDENT_TABLE_BUDGET

    if use_resident:
        kernel = functools.partial(
            _embed_resident_kernel, emb_factor=emb_factor, s_padded=S_pad, tile=T)
        table_spec = pl.BlockSpec((V, D), lambda st, b, ids: (0, 0))   # fetched once, stays put
        scratch_shapes = [pltpu.VMEM((T, D), embed_table.dtype)]
        # Independent (st, b) steps -> both axes shardable across v7x's 2 TensorCores.
        dim_sem = ("parallel", "parallel")
        vmem_need = resident_need
    else:
        kernel = functools.partial(
            _embed_gather_kernel, emb_factor=emb_factor, s_padded=S_pad, tile=T, num_b=B)
        table_spec = pl.BlockSpec(memory_space=pl.ANY)                 # table stays in HBM
        scratch_shapes = [
            pltpu.VMEM((2, T, D), embed_table.dtype),                  # double-buffered gather
            pltpu.SemaphoreType.DMA((2,)),                             # one semaphore per slot
        ]
        # Cross-step DMA prefetch carries state between steps -> keep the grid sequential.
        dim_sem = ("arbitrary", "arbitrary")
        vmem_need = 2 * pos_tile_bytes + 2 * out_tile_bytes + 2 * tile_bytes + (2 << 20)

    vmem_limit = int(min(_VMEM_CAP, max(vmem_need, 32 << 20)))

    out = pl.pallas_call(
        kernel,
        out_shape=jax.ShapeDtypeStruct((B, S_pad, D), embed_table.dtype),
        grid_spec=pltpu.PrefetchScalarGridSpec(
            num_scalar_prefetch=1,                    # flattened ids -> SMEM
            grid=(n_st, B),                           # batch innermost: pos tile reused across B
            in_specs=[
                table_spec,
                pl.BlockSpec((T, D), lambda st, b, ids: (st, 0)),      # contiguous pos tile
            ],
            out_specs=pl.BlockSpec((1, T, D), lambda st, b, ids: (b, st, 0)),
            scratch_shapes=scratch_shapes,
        ),
        compiler_params=pltpu.CompilerParams(
            dimension_semantics=dim_sem, vmem_limit_bytes=vmem_limit),
    )(ids_flat, embed_table, pos)

    if S_pad != S:
        out = out[:, :S, :]
    return out


if __name__ == "__main__":
    vocab_size, embed_dim = 64, 32
    B, S = 2, 8

    key = jax.random.PRNGKey(0)
    k_emb, k_ids = jax.random.split(key)

    # nn.Embedding default init: N(0, 1)
    embed_table = jax.random.normal(k_emb, (vocab_size, embed_dim), dtype=jnp.float32)
    ids = jax.random.randint(k_ids, (B, S), 0, vocab_size, dtype=jnp.int32)
    pos_embed = make_pos_embed(_MAX_CONTEXT_SIZE, embed_dim)

    # Pure-JAX reference (Dropout(p=0) is the identity, so nothing to apply).
    ref = embed_table[ids] * jnp.sqrt(jnp.float32(embed_dim)) + pos_embed[:S, :][None, :, :]

    # Primary path: embedding table VMEM-resident.
    out = jax.block_until_ready(embed_forward(ids, embed_table, pos_embed))
    assert out.shape == (B, S, embed_dim), out.shape
    assert out.dtype == jnp.float32
    assert jnp.allclose(out, ref, atol=1e-5, rtol=1e-5), "resident path mismatch vs reference"

    # Fallback path (used when the table exceeds the VMEM budget): exercise it too.
    out_hbm = jax.block_until_ready(
        embed_forward(ids, embed_table, pos_embed, force_hbm_gather=True))
    assert jnp.allclose(out_hbm, ref, atol=1e-5, rtol=1e-5), "HBM-gather path mismatch vs reference"

    print("KERNEL_OK")
</pallas_src>

<mosaic_0001>
module attributes {stable_mosaic.version = 11 : i64} {
  func.func @_embed_resident_kernel(%arg0: i32, %arg1: i32, %arg2: memref<16xi32, #tpu.memory_space<smem>>, %arg3: memref<64x32xf32, #tpu.memory_space<vmem>>, %arg4: memref<8x32xf32, #tpu.memory_space<vmem>>, %arg5: memref<1x8x32xf32, #tpu.memory_space<vmem>>, %arg6: memref<8x32xf32, #tpu.memory_space<vmem>>) attributes {dimension_semantics = [#tpu.dimension_semantics<parallel>, #tpu.dimension_semantics<parallel>], iteration_bounds = array<i64: 1, 2>, scalar_prefetch = 1 : i64, scratch_operands = 1 : i64, tpu.core_type = #tpu.core_type<tc>, window_params = [{pipeline_mode = #tpu.pipeline_mode<synchronous>, transform_indices = @transform_0, window_bounds = array<i64: 64, 32>}, {transform_indices = @transform_1, window_bounds = array<i64: 8, 32>}, {transform_indices = @transform_2, window_bounds = array<i64: 1, 8, 32>}]} {
    %c8_i32 = arith.constant 8 : i32
    %0 = arith.muli %arg1, %c8_i32 : i32
    %c8_i32_0 = arith.constant 8 : i32
    %1 = arith.muli %arg0, %c8_i32_0 : i32
    %2 = arith.addi %0, %1 : i32
    %c0_i32 = arith.constant 0 : i32
    %c8_i32_1 = arith.constant 8 : i32
    %3 = arith.addi %c0_i32, %c8_i32_1 : i32
    %c1_i32 = arith.constant 1 : i32
    scf.for %arg7 = %c0_i32 to %3 step %c1_i32  : i32 {
      %c1_i32_9 = arith.constant 1 : i32
      %12 = arith.muli %arg7, %c1_i32_9 : i32
      %c0_i32_10 = arith.constant 0 : i32
      %13 = arith.addi %c0_i32_10, %12 : i32
      %14 = arith.addi %2, %13 : i32
      %15 = arith.index_cast %14 : i32 to index
      %16 = memref.load %arg2[%15] : memref<16xi32, #tpu.memory_space<smem>>
      %17 = arith.index_cast %16 : i32 to index
      %c0_11 = arith.constant 0 : index
      %18 = vector.load %arg3[%17, %c0_11] : memref<64x32xf32, #tpu.memory_space<vmem>>, vector<1x32xf32>
      %19 = arith.index_cast %13 : i32 to index
      %c0_12 = arith.constant 0 : index
      %20 = vector.load %arg6[%19, %c0_12] : memref<8x32xf32, #tpu.memory_space<vmem>>, vector<1x32xf32>
      tpu.vector_store %arg6[%19, %c0_12], %18 {strides = array<i32>} : memref<8x32xf32, #tpu.memory_space<vmem>>, vector<1x32xf32>,
    }
    %c8_i32_2 = arith.constant 8 : i32
    %c0 = arith.constant 0 : index
    %c0_3 = arith.constant 0 : index
    %4 = vector.load %arg6[%c0, %c0_3] : memref<8x32xf32, #tpu.memory_space<vmem>>, vector<8x32xf32>
    %cst = arith.constant 5.65685415 : f32
    %5 = vector.broadcast %cst : f32 to vector<8x32xf32>
    %6 = arith.mulf %4, %5 : vector<8x32xf32>
    %c0_4 = arith.constant 0 : index
    %c0_5 = arith.constant 0 : index
    %7 = vector.load %arg4[%c0_4, %c0_5] : memref<8x32xf32, #tpu.memory_space<vmem>>, vector<8x32xf32>
    %8 = arith.addf %6, %7 : vector<8x32xf32>
    %c0_6 = arith.constant 0 : index
    %c0_7 = arith.constant 0 : index
    %c0_8 = arith.constant 0 : index
    %9 = vector.load %arg5[%c0_6, %c0_7, %c0_8] : memref<1x8x32xf32, #tpu.memory_space<vmem>>, vector<1x8x32xf32>
    %10 = vector.shape_cast %9 : vector<1x8x32xf32> to vector<8x32xf32>
    %11 = vector.shape_cast %8 : vector<8x32xf32> to vector<1x8x32xf32>
    tpu.vector_store %arg5[%c0_6, %c0_7, %c0_8], %11 {strides = array<i32>} : memref<1x8x32xf32, #tpu.memory_space<vmem>>, vector<1x8x32xf32>,
    return
  }
  func.func @transform_0(%arg0: i32, %arg1: i32, %arg2: memref<16xi32, #tpu.memory_space<smem>>) -> (i32, i32) {
    %c0_i32 = arith.constant 0 : i32
    %c0_i32_0 = arith.constant 0 : i32
    %c0_i32_1 = arith.constant 0 : i32
    return %c0_i32, %c0_i32_0 : i32, i32
  }
  func.func @transform_1(%arg0: i32, %arg1: i32, %arg2: memref<16xi32, #tpu.memory_space<smem>>) -> (i32, i32) {
    %c0_i32 = arith.constant 0 : i32
    %c0_i32_0 = arith.constant 0 : i32
    return %arg0, %c0_i32 : i32, i32
  }
  func.func @transform_2(%arg0: i32, %arg1: i32, %arg2: memref<16xi32, #tpu.memory_space<smem>>) -> (i32, i32, i32) {
    %c0_i32 = arith.constant 0 : i32
    %c0_i32_0 = arith.constant 0 : i32
    return %arg1, %arg0, %c0_i32 : i32, i32, i32
  }
}

</mosaic_0001>

<llo_original>
// kernel: tpu_custom_call.1
$region0: #{tpu_custom_call.1}
  #allocation0 [shape = 'u32[]', space=smem, size = 0x4, offset = 0x4, fixed_abs, tag = 'smem constant byte address 0x4 - core index']
  #allocation1 [shape = 'u32[72,128]{1,0:T(1,128)}', space=vmem, size = 0x9000, scoped, tag = 'internal scratch']
  #allocation2 [shape = 'f32[8,32]{1,0:T(8,128)}', space=vmem, size = 0x1000, scoped, tag = 'scratch operand']
  #allocation3 [shape = 's32[1]{0}', space=sflag, size = 0x4, scoped, tag = 'scoped memory for tpu_custom_call.1']
  #allocation4 [shape = 'u8[512]{0}', space=smem, size = 0x200, scoped, tag = 'prefetched SMEM operand 0']
  %s0 = inlined_call_operand.vmem [shape: s32[16], index: 0, kind: input, shape index: {}]
  %s1 = inlined_call_operand.vmem [shape: f32[64,32], index: 1, kind: input, shape index: {}]
  %s2 = inlined_call_operand.vmem [shape: f32[8,32], index: 2, kind: input, shape index: {}]
  %s3 = inlined_call_operand.hbm [shape: f32[2,8,32], index: 3, kind: output, shape index: {}]
  %s4 = sld [smem:[#allocation0]]
  $region48: #{tpu_custom_call.1} parent=0
    _
  %s6 = ssub.s32 1, %s4
  %s7 = scalar_select 0, %s6, %s4
  %s9 = sshll.u32 %s0, 4
  %s10 = int_to_ptr.vmem [resolvable:$true] %s9
  %12 = dma.vmem_to_smem %s10, 16, [#allocation4], [#allocation3]
  %14 = dma.done [#allocation3], 16
  %15 = sfence
  $region1: #{tpu_custom_call.1} parent=0
    #allocation5 [shape = 'u8[8192]{0}', space=vmem, size = 0x2000, scoped, tag = 'output window, operand 0']
    #allocation6 [shape = 's32[2]{0}', space=sflag, size = 0x8, scoped, tag = 'scoped memory for tpu_custom_call.1']
    %16 = vsyncpa [#allocation6], 0
    %s17 = scalar_lea.sflag [#allocation6], 1
    %18 = vsyncpa %s17, 0
    loop: start=0, step=1, limit=4
    $region2: #{tpu_custom_call.1} parent=1 // loop_pre_header
      _
    $region3: #{tpu_custom_call.1} parent=1 // loop_header
      %s20 = sphi 0, %s24
      %p21 = scmp.ge.s32.totalorder %s20, 4
      %s27 = sphi 0, %s39
      %s28 = sphi 0, %s35
      %s29 = sphi 0, %s27
      %s30 = sphi 0, %s28
      %s31 = sphi 0, %s29
      %s32 = sphi 0, %s30
      %s40 = sphi 0, %s40
      %s42 = sphi 0, %s40
      %s43 = sphi 0, %s42
      %s57 = sphi 0, %s43
      %s63 = sphi 0, %s65
      %s66 = sphi 0, %s63
      %s67 = sphi 0, %s66
      %s83 = sphi 0, %s67
      %s91 = sphi 0, %s93
      %s94 = sphi 0, %s91
      %s95 = sphi 0, %s94
      %s111 = sphi 0, %s95
    $region4: #{tpu_custom_call.1} parent=1 // loop_header_branch
      %23 = sbr.rel (%p21) target = $region8
    $region5: #{tpu_custom_call.1} parent=1 // loop_body
      %s25 = ssub.s32 %s20, 1
      %s26 = ssub.s32 %s20, 2
      %s33 = sadd.s32 1, %s28
      %p34 = scmp.ge.s32.totalorder %s33, 2
      %s35 = scalar_select %p34, 0, %s33
      %s36 = sadd.s32 1, %s27
      %s37 = scalar_select %p34, %s36, %s27
      %p38 = scmp.ge.s32.totalorder %s37, 1
      %s39 = scalar_select %p38, 0, %s37
      %s41 = sadd.s32 %s40, 1
      %p44 = scmp.eq.s32.totalorder %s20, 1
      %p45 = scmp.ne.s32.totalorder %s40, %s42
      %p46 = scmp.eq.s32.totalorder %s20, 0
      %p47 = por %p45, %p46
      %p48 = scmp.ne.s32.totalorder %s40, %s42
      %p49 = scmp.eq.s32.totalorder %s25, 1
      %p50 = por %p48, %p49
      %p51 = scmp.ne.s32.totalorder %s42, %s43
      %p52 = scmp.eq.s32.totalorder %s25, 0
      %p53 = por %p51, %p52
      %p54 = scmp.ne.s32.totalorder %s42, %s43
      %p55 = scmp.eq.s32.totalorder %s26, 1
      %p56 = por %p54, %p55
      %p58 = scmp.ne.s32.totalorder %s43, %s57
      %p59 = scmp.eq.s32.totalorder %s26, 0
      %p60 = por %p58, %p59
      %s61 = ssub.s32 %s27, %s39
      %p62 = scmp.eq.s32.totalorder %s61, 0
      %s64 = sadd.s32 %s63, 1
      %s65 = scalar_select %p62, %s63, %s64
      %p68 = pneg %p62
      %p69 = scmp.eq.s32.totalorder %s20, 1
      %p70 = por %p68, %p69
      %p71 = scmp.ne.s32.totalorder %s63, %s66
      %p72 = scmp.eq.s32.totalorder %s20, 0
      %p73 = por %p71, %p72
      %p74 = scmp.ne.s32.totalorder %s63, %s66
      %p75 = scmp.eq.s32.totalorder %s25, 1
      %p76 = por %p74, %p75
      %p77 = scmp.ne.s32.totalorder %s66, %s67
      %p78 = scmp.eq.s32.totalorder %s25, 0
      %p79 = por %p77, %p78
      %p80 = scmp.ne.s32.totalorder %s66, %s67
      %p81 = scmp.eq.s32.totalorder %s26, 1
      %p82 = por %p80, %p81
      %p84 = scmp.ne.s32.totalorder %s67, %s83
      %p85 = scmp.eq.s32.totalorder %s26, 0
      %p86 = por %p84, %p85
      %s87 = ssub.s32 %s28, %s35
      %s88 = ssub.s32 %s27, %s39
      %s89 = sor.u32 %s87, %s88
      %p90 = scmp.eq.s32.totalorder %s89, 0
      %s92 = sadd.s32 %s91, 1
      %s93 = scalar_select %p90, %s91, %s92
      %p96 = pneg %p90
      %p97 = scmp.eq.s32.totalorder %s20, 1
      %p98 = por %p96, %p97
      %p99 = scmp.ne.s32.totalorder %s91, %s94
      %p100 = scmp.eq.s32.totalorder %s20, 0
      %p101 = por %p99, %p100
      %p102 = scmp.ne.s32.totalorder %s91, %s94
      %p103 = scmp.eq.s32.totalorder %s25, 1
      %p104 = por %p102, %p103
      %p105 = scmp.ne.s32.totalorder %s94, %s95
      %p106 = scmp.eq.s32.totalorder %s25, 0
      %p107 = por %p105, %p106
      %p108 = scmp.ne.s32.totalorder %s94, %s95
      %p109 = scmp.eq.s32.totalorder %s26, 1
      %p110 = por %p108, %p109
      %p112 = scmp.ne.s32.totalorder %s95, %s111
      %p113 = scmp.eq.s32.totalorder %s26, 0
      %p114 = por %p112, %p113
      %p115 = scmp.le.s32.totalorder 1, %s20
      %p116 = scmp.lt.s32.totalorder %s20, 3
      %p117 = pnand %p115, %p116
      %p118 = pneg %p117
      // Predicated region
      $region9: #{tpu_custom_call.1} parent=5 // pred_check
        _
      $region10: #{tpu_custom_call.1} parent=5 // pred_check_branch
        %120 = sbr.rel (%p117) target = $region12
      $region11: #{tpu_custom_call.1} parent=5 // pred_region
        %s121 = ssub.s32 %s20, 1
        // Predicated region
        $region13: #{tpu_custom_call.1} parent=11 // pred_check
          %p122 = pneg %p53
        $region14: #{tpu_custom_call.1} parent=11 // pred_check_branch
          %124 = sbr.rel (%p122) target = $region16
        $region15: #{tpu_custom_call.1} parent=11 // pred_region
          _
        $region16: #{tpu_custom_call.1} parent=11 // pred_fallthru
          _
        // Predicated region
        $region17: #{tpu_custom_call.1} parent=11 // pred_check
          %p125 = pneg %p79
        $region18: #{tpu_custom_call.1} parent=11 // pred_check_branch
          %127 = sbr.rel (%p125) target = $region20
        $region19: #{tpu_custom_call.1} parent=11 // pred_region
          %p128 = scmp.lt.s32.totalorder %s29, 0
          %s129 = scalar_select %p128, %s29, 0
          %s130 = smul.addr %s129, 8
          %s131 = scalar_lea.vmem %s2, %s130
        $region20: #{tpu_custom_call.1} parent=11 // pred_fallthru
          _
      $region12: #{tpu_custom_call.1} parent=5 // pred_fallthru
        _
      %p132 = scmp.lt.s32.totalorder %s20, 2
      // Predicated region
      $region21: #{tpu_custom_call.1} parent=5 // pred_check
        %p133 = pneg %p132
      $region22: #{tpu_custom_call.1} parent=5 // pred_check_branch
        %135 = sbr.rel (%p133) target = $region24
      $region23: #{tpu_custom_call.1} parent=5 // pred_region
        _
      $region24: #{tpu_custom_call.1} parent=5 // pred_fallthru
        _
      %p136 = scmp.le.s32.totalorder 1, %s20
      %p137 = scmp.lt.s32.totalorder %s20, 3
      %p138 = pnand %p136, %p137
      %p139 = pneg %p138
      // Predicated region
      $region25: #{tpu_custom_call.1} parent=5 // pred_check
        _
      $region26: #{tpu_custom_call.1} parent=5 // pred_check_branch
        %141 = sbr.rel (%p138) target = $region28
      $region27: #{tpu_custom_call.1} parent=5 // pred_region
        %s142 = ssub.s32 %s20, 1
        %p143 = pneg %p53
        %p144 = pneg %p50
        %p145 = scmp.lt.s32.totalorder %s29, 0
        %s146 = scalar_select %p145, %s29, 0
        %s147 = smul.addr %s146, 8
        %s148 = scalar_lea.vmem %s2, %s147
        %p149 = pneg %p79
        %p150 = pneg %p76
        %p151 = pneg %p107
        %p152 = pneg %p104
        %s153 = sand.u32 %s94, 1
        %s154 = scalar_lea.sflag [#allocation6], %s153
        %s155 = sand.u32 %s94, 1
        %s156 = smul.addr %s155, 8
        %s157 = scalar_lea.vmem [#allocation5], %s156
        %p158 = scmp.lt.s32.totalorder %s29, 0
        %s159 = scalar_select %p158, %s29, 0
        %s160 = smul.addr %s159, 8
        %s161 = scalar_lea.vmem %s2, %s160
        %s162 = smul.u32 %s30, 8
        %s163 = smul.u32 %s29, 8
        %s164 = sadd.s32 %s162, %s163
        loop: start=0, step=1, limit=8
        $region29: #{tpu_custom_call.1} parent=27 // loop_pre_header
          _
        $region30: #{tpu_custom_call.1} parent=27 // loop_header
          %s166 = sphi 0, %s170
          %p167 = scmp.ge.s32.totalorder %s166, 8
        $region31: #{tpu_custom_call.1} parent=27 // loop_header_branch
          %169 = sbr.rel (%p167) target = $region35
        $region32: #{tpu_custom_call.1} parent=27 // loop_body
          %s171 = sadd.s32 %s164, %s166
          %s172 = sld [smem:[#allocation4 + %s171]]
          %s173 = scalar_lea.vmem %s1, %s172
          %v174 = vld [vmem:[%s173] sm:$0x1]
          %s175 = scalar_lea.vmem [#allocation2], %s166
          %vm176 = vcmask 253952
          %177 = vst.msk [vmem:[%s175] sm:$0x1] %vm176, %v174
        $region33: #{tpu_custom_call.1} parent=27 // loop_footer
          %s170 = sadd.s32 1, %s166
        $region34: #{tpu_custom_call.1} parent=27 // loop_footer_branch
          %165 = sbr.rel target = $region30
        $region35: #{tpu_custom_call.1} parent=27 // loop_exit
          _
        %v178 = vld [vmem:[#allocation2] sm:$0xff]
        %v179 = vmul.f32 %v178, 5.656854
        %v180 = vld [vmem:[%s161] sm:$0xff]
        %v181 = vadd.f32 %v179, %v180
        %vm182 = vcmask 261120
        %183 = vst.msk [vmem:[%s157] sm:$0xff] %vm182, %v181
        %s184 = sand.u32 %s94, 1
        %s185 = scalar_lea.sflag [#allocation6], %s184
        %s186 = sand.u32 %s94, 1
        %s187 = smul.addr %s186, 8
        %s188 = scalar_lea.vmem [#allocation5], %s187
        // Predicated region
        $region36: #{tpu_custom_call.1} parent=27 // pred_check
          %p189 = pneg %p104
        $region37: #{tpu_custom_call.1} parent=27 // pred_check_branch
          %191 = sbr.rel (%p189) target = $region39
        $region38: #{tpu_custom_call.1} parent=27 // pred_region
          %193 = vsyncadd %s185, 0
          %s194 = sadd.s32 %s29, %s30
          %s195 = smul.addr %s194, 8
          %s196 = scalar_lea.hbm %s3, %s195
          %s198 = sshll.u32 %s188, 4
          %s199 = int_to_ptr.vmem [resolvable:$true] %s198
          %s200 = sshll.u32 %s196, 4
          %s201 = int_to_ptr.hbm [resolvable:$true] %s200
          %203 = dma.vmem_to_hbm [thread:$0]  %s199, 128, %s201, %s185
        $region39: #{tpu_custom_call.1} parent=27 // pred_fallthru
          _
      $region28: #{tpu_custom_call.1} parent=5 // pred_fallthru
        _
      %p204 = scmp.le.s32.totalorder 2, %s20
      // Predicated region
      $region40: #{tpu_custom_call.1} parent=5 // pred_check
        %p205 = pneg %p204
      $region41: #{tpu_custom_call.1} parent=5 // pred_check_branch
        %207 = sbr.rel (%p205) target = $region43
      $region42: #{tpu_custom_call.1} parent=5 // pred_region
        %s208 = ssub.s32 %s20, 2
        // Predicated region
        $region44: #{tpu_custom_call.1} parent=42 // pred_check
          %p209 = pneg %p110
        $region45: #{tpu_custom_call.1} parent=42 // pred_check_branch
          %211 = sbr.rel (%p209) target = $region47
        $region46: #{tpu_custom_call.1} parent=42 // pred_region
          %s212 = sand.u32 %s95, 1
          %s213 = scalar_lea.sflag [#allocation6], %s212
          %s214 = sand.u32 %s95, 1
          %s215 = smul.addr %s214, 8
          %s216 = scalar_lea.vmem [#allocation5], %s215
          %218 = dma.done %s213, 128
        $region47: #{tpu_custom_call.1} parent=42 // pred_fallthru
          _
      $region43: #{tpu_custom_call.1} parent=5 // pred_fallthru
        _
    $region6: #{tpu_custom_call.1} parent=1 // loop_footer
      %s24 = sadd.s32 1, %s20
    $region7: #{tpu_custom_call.1} parent=1 // loop_footer_branch
      %19 = sbr.rel target = $region3
    $region8: #{tpu_custom_call.1} parent=1 // loop_exit
      _
    %219 = vsyncpa [#allocation6], 1
    %s220 = scalar_lea.sflag [#allocation6], 1
    %221 = vsyncpa %s220, 1

</llo_original>
